<compile_context>
chip_gen: v5e
topology: v5e:2x2
jax: 0.10.0
libtpu: 0.0.40
codegen_flags: <defaults>
</compile_context>

<pallas_src>
import functools

import jax
import jax.numpy as jnp
from jax import lax
from jax.experimental import pallas as pl
from jax.experimental.pallas import tpu as pltpu

EPS = 1e-6


def _round_up(x, m):
    return (x + m - 1) // m * m


def _hist_kernel(x_ref, out_ref, acc_ref, *, sigma, hist_lo, hist_hi, h,
                 tile_n, n_valid, tiles_per_split):
    # x_ref:   (1, 3, TN) channel-major pixel tile
    # out_ref: (1, 1, 3, h, h) per-(image, split) UNNORMALIZED histogram
    #          (written at the last pixel tile of the split only)
    # acc_ref: (2h, 2h) f32 accumulator, resident across the pixel-tile axis
    s = pl.program_id(1)
    n = pl.program_id(2)

    @pl.when(n == 0)
    def _():
        acc_ref[...] = jnp.zeros_like(acc_ref)

    x = x_ref[0].astype(jnp.float32)                       # (3, TN)
    inv_sigma = 1.0 / sigma

    # intensity scale I_y = sqrt(r^2 + g^2 + b^2 + eps); mask padded tail
    # pixels by zeroing Iy (their LHS columns become exactly zero).
    iy = jnp.sqrt(jnp.sum(x * x, axis=0, keepdims=True) + EPS)   # (1, TN)
    col = lax.broadcasted_iota(jnp.int32, (1, tile_n), 1)
    pix = (s * tiles_per_split + n) * tile_n + col
    iy = jnp.where(pix < n_valid, iy, 0.0)

    lx = jnp.log(x + EPS) * inv_sigma                      # (3, TN), 1/sigma folded

    # Stacked u rows built by slab slicing (no concatenation):
    #   LHS rows: u_rg = lr-lg, u_rb = lr-lb   ->  lx[0:1] - lx[1:3]
    #   RHS rows: u_rb = lr-lb, u_gb = lg-lb   ->  lx[0:2] - lx[2:3]
    u_lhs = (lx[0:1, :] - lx[1:3, :]).reshape(2, 1, tile_n)
    u_rhs = (lx[0:2, :] - lx[2:3, :]).reshape(2, 1, tile_n)

    # bin centers / sigma, exactly antisymmetric about 0
    step = (hist_hi - hist_lo) / (h - 1)
    row = lax.broadcasted_iota(jnp.int32, (1, h, 1), 1).astype(jnp.float32)
    bins = (row - 0.5 * (h - 1)) * (step * inv_sigma)      # (1, h, 1)

    def kfn(u):  # inverse-quadratic kernel: (2, 1, TN) -> (2, h, TN), lane-dense
        d = u - bins
        return pl.reciprocal(1.0 + d * d, approx=True)

    # f32 element-wise slabs, bf16 MXU operands (f32 accumulation below).
    # reshape (2, h, TN) -> (2h, TN) is layout-free since h % 8 == 0.
    lhs = (kfn(u_lhs) * iy[None]).reshape(2 * h, tile_n).astype(jnp.bfloat16)
    rhs = kfn(u_rhs).reshape(2 * h, tile_n).astype(jnp.bfloat16)

    # One fused (2h, TN) x (2h, TN) -> (2h, 2h) MXU dot covering the three
    # needed products: quadrants (rg,rb), (rg,gb), (rb,gb).
    acc_ref[...] += lax.dot_general(
        lhs, rhs, (((1,), (1,)), ((), ())),
        preferred_element_type=jnp.float32)

    @pl.when(n == pl.num_programs(2) - 1)
    def _():
        acc = acc_ref[...]
        q0 = acc[0:h, 0:h]            # (Iy k_rg)^T k_rb                -> hist[0]
        q1 = acc[0:h, h:2 * h]        # (Iy k_rg)^T k_gb -> flip rows   -> hist[1]
        q2 = acc[h:2 * h, h:2 * h]    # (Iy k_rb)^T k_gb -> flip both   -> hist[2]

        # bin symmetry: k(-u) is a bin-flip of k(u).  Flip the tiny (h, h)
        # results with an exchange-matrix matmul (cheap, MXU, no lax.rev).
        ii = lax.broadcasted_iota(jnp.int32, (h, h), 0)
        jj = lax.broadcasted_iota(jnp.int32, (h, h), 1)
        exch = (ii + jj == h - 1).astype(jnp.float32)      # anti-identity
        h1 = jnp.dot(exch, q1, preferred_element_type=jnp.float32)
        h2 = jnp.dot(jnp.dot(exch, q2, preferred_element_type=jnp.float32),
                     exch, preferred_element_type=jnp.float32)

        out_ref[0, 0, 0, :, :] = q0
        out_ref[0, 0, 1, :, :] = h1
        out_ref[0, 0, 2, :, :] = h2


def rgb_uv_hist_block(x, *, h=64, insz=150, sigma=0.02,
                      hist_boundary=(-3.0, 3.0), max_tile=8192, num_splits=2):
    """x: (B, C, H, W) NCHW. Returns (B, 3, h, h) normalized RGB-uv histograms."""
    B, C, H, W = x.shape
    lo, hi = sorted((float(hist_boundary[0]), float(hist_boundary[1])))
    if abs(lo + hi) > 1e-6 * max(1.0, abs(hi)):
        # TODO(synk): asymmetric hist_boundary breaks the bin-flip symmetry trick.
        raise NotImplementedError("hist_boundary must be symmetric about 0")

    x = jnp.clip(x, 0.0, 1.0)
    if H > insz or W > insz:
        # matches F.interpolate(mode='bilinear', align_corners=False)
        # TODO(synk): 'sampling' resize mode not implemented.
        x = jax.image.resize(x, (B, C, insz, insz), method="bilinear")
        H = W = insz
    if C > 3:
        x = x[:, :3]
    N = H * W

    # pixel-axis parallel splits: keeps both v7x TensorCores busy at small B;
    # harmless on v5e/v6e.  Each (image, split) produces an unnormalized
    # partial histogram; the wrapper sums the partials and normalizes.
    splits = max(1, min(int(num_splits), pl.cdiv(N, 128)))
    n_split = pl.cdiv(N, splits)
    n_tiles = pl.cdiv(n_split, max_tile)                # tiles per split
    tn = _round_up(pl.cdiv(n_split, n_tiles), 128)      # minimize padded pixels
    n_pad = splits * n_tiles * tn

    # glue: channel-major flat layout (B, 3, N_pad); padded tail masked via Iy.
    x_flat = x.reshape(B, 3, N).astype(jnp.float32)
    if n_pad != N:
        x_flat = jnp.pad(x_flat, ((0, 0), (0, 0), (0, n_pad - N)))

    kernel = functools.partial(
        _hist_kernel, sigma=float(sigma), hist_lo=lo, hist_hi=hi, h=h,
        tile_n=tn, n_valid=N, tiles_per_split=n_tiles)

    # TODO(synk): green_only=True, 'thresholding'/'RBF' methods and
    # intensity_scale=False variants not implemented (module defaults only).
    partial_hists = pl.pallas_call(
        kernel,
        out_shape=jax.ShapeDtypeStruct((B, splits, 3, h, h), jnp.float32),
        grid_spec=pltpu.PrefetchScalarGridSpec(
            num_scalar_prefetch=0,
            grid=(B, splits, n_tiles),
            in_specs=[pl.BlockSpec((1, 3, tn),
                                   lambda b, s, n: (b, 0, s * n_tiles + n))],
            out_specs=pl.BlockSpec((1, 1, 3, h, h),
                                   lambda b, s, n: (b, s, 0, 0, 0)),
            scratch_shapes=[pltpu.VMEM((2 * h, 2 * h), jnp.float32)],
        ),
        compiler_params=pltpu.CompilerParams(
            dimension_semantics=("parallel", "parallel", "arbitrary"),
            vmem_limit_bytes=48 * 1024 * 1024),
    )(x_flat)

    hists = jnp.sum(partial_hists, axis=1)                        # (B, 3, h, h)
    total = jnp.sum(hists, axis=(1, 2, 3), keepdims=True) + EPS
    return hists / total


def _reference(x, *, h=64, sigma=0.02, hist_boundary=(-3.0, 3.0)):
    """Pure-JAX reference of the PyTorch forward (no resize branch needed here)."""
    x = jnp.clip(x, 0.0, 1.0)
    if x.shape[1] > 3:
        x = x[:, :3]
    B = x.shape[0]
    N = x.shape[2] * x.shape[3]
    I = jnp.transpose(x.reshape(B, 3, N), (0, 2, 1)).astype(jnp.float32)
    Iy = jnp.sqrt(jnp.sum(I * I, axis=-1, keepdims=True) + EPS)
    logs = jnp.log(I + EPS)
    bins = jnp.linspace(hist_boundary[0], hist_boundary[1], h,
                        dtype=jnp.float32)

    def kfn(u):
        d = jnp.abs(u[..., None] - bins)
        return 1.0 / (1.0 + (d * d) / (sigma * sigma))

    pairs = [(0, 1, 0, 2), (1, 0, 1, 2), (2, 0, 2, 1)]
    hists = []
    for (ua, ub, va, vb) in pairs:
        ku = kfn(logs[..., ua] - logs[..., ub])     # (B, N, h)
        kv = kfn(logs[..., va] - logs[..., vb])     # (B, N, h)
        hists.append(jnp.einsum("bni,bnj->bij", Iy * ku, kv))
    hists = jnp.stack(hists, axis=1)                # (B, 3, h, h)
    tot = jnp.sum(hists, axis=(1, 2, 3)).reshape(-1, 1, 1, 1) + EPS
    return hists / tot


def _check(out, ref, shape, rtol=5e-2, atol=2e-3):
    assert out.shape == shape, out.shape
    assert bool(jnp.all(jnp.isfinite(out)))
    sums = jnp.sum(out, axis=(1, 2, 3))
    assert bool(jnp.all(jnp.abs(sums - 1.0) < 1e-3)), sums
    # loose tol: approx reciprocal (EUP) + bf16 MXU operands (f32 accumulate)
    assert bool(jnp.allclose(out, ref, rtol=rtol, atol=atol)), \
        float(jnp.max(jnp.abs(out - ref)))


if __name__ == "__main__":
    key0, key1 = jax.random.split(jax.random.PRNGKey(0))

    # C=4 exercises the "take first 3 channels" path; N=256 -> 2 parallel
    # splits of one pixel tile each (default num_splits=2).
    B, C, H, W = 2, 4, 16, 16
    x = jax.random.uniform(key0, (B, C, H, W), dtype=jnp.float32,
                           minval=-0.1, maxval=1.1)
    ref = jax.block_until_ready(_reference(x, h=64, sigma=0.02))

    out = jax.block_until_ready(rgb_uv_hist_block(x, h=64, insz=150, sigma=0.02))
    _check(out, ref, (B, 3, 64, 64))

    # multi-tile accumulation path: single split, TN=128 -> 2 tiles per image
    out2 = jax.block_until_ready(
        rgb_uv_hist_block(x, h=64, insz=150, sigma=0.02,
                          max_tile=128, num_splits=1))
    _check(out2, ref, (B, 3, 64, 64))

    # tail-masking path: N = 13*11 = 143 pixels, padded to 256 across 2 splits
    x3 = jax.random.uniform(key1, (1, 3, 13, 11), dtype=jnp.float32)
    ref3 = jax.block_until_ready(_reference(x3, h=64, sigma=0.02))
    out3 = jax.block_until_ready(rgb_uv_hist_block(x3, h=64, insz=150, sigma=0.02))
    _check(out3, ref3, (1, 3, 64, 64))

    print("KERNEL_OK")
</pallas_src>

<mosaic_0001>
module attributes {stable_mosaic.version = 11 : i64} {
  func.func @_hist_kernel(%arg0: i32, %arg1: i32, %arg2: i32, %arg3: memref<1x3x128xf32, #tpu.memory_space<vmem>>, %arg4: memref<1x1x3x64x64xf32, #tpu.memory_space<vmem>>, %arg5: memref<128x128xf32, #tpu.memory_space<vmem>>) attributes {dimension_semantics = [#tpu.dimension_semantics<parallel>, #tpu.dimension_semantics<parallel>, #tpu.dimension_semantics<arbitrary>], iteration_bounds = array<i64: 2, 2, 1>, scalar_prefetch = 0 : i64, scratch_operands = 1 : i64, tpu.core_type = #tpu.core_type<tc>, window_params = [{transform_indices = @transform_0, window_bounds = array<i64: 1, 3, 128>}, {transform_indices = @transform_1, window_bounds = array<i64: 1, 1, 3, 64, 64>}]} {
    %c0_i32 = arith.constant 0 : i32
    %0 = arith.cmpi eq, %arg2, %c0_i32 : i32
    %1 = arith.extui %0 : i1 to i32
    %c0_i32_0 = arith.constant 0 : i32
    %2 = arith.cmpi ne, %1, %c0_i32_0 : i32
    scf.if %2 {
      %cst_18 = arith.constant 0.000000e+00 : f32
      %70 = vector.broadcast %cst_18 : f32 to vector<128x128xf32>
      %c0_19 = arith.constant 0 : index
      %c0_20 = arith.constant 0 : index
      %71 = vector.load %arg5[%c0_19, %c0_20] : memref<128x128xf32, #tpu.memory_space<vmem>>, vector<128x128xf32>
      tpu.vector_store %arg5[%c0_19, %c0_20], %70 {strides = array<i32>} : memref<128x128xf32, #tpu.memory_space<vmem>>, vector<128x128xf32>,
    } else {
    }
    %c0 = arith.constant 0 : index
    %c0_1 = arith.constant 0 : index
    %c0_2 = arith.constant 0 : index
    %3 = vector.load %arg3[%c0, %c0_1, %c0_2] : memref<1x3x128xf32, #tpu.memory_space<vmem>>, vector<1x3x128xf32>
    %4 = vector.shape_cast %3 : vector<1x3x128xf32> to vector<3x128xf32>
    %5 = arith.mulf %4, %4 : vector<3x128xf32>
    %cst = arith.constant dense<0.000000e+00> : vector<128xf32>
    %6 = vector.multi_reduction <add>, %5, %cst [0] : vector<3x128xf32> to vector<128xf32>
    %7 = vector.shape_cast %6 : vector<128xf32> to vector<1x128xf32>
    %cst_3 = arith.constant 9.99999997E-7 : f32
    %8 = vector.broadcast %cst_3 : f32 to vector<1x128xf32>
    %9 = arith.addf %7, %8 : vector<1x128xf32>
    %10 = math.sqrt %9 : vector<1x128xf32>
    %11 = tpu.iota {dimensions = array<i32: 1>} : vector<1x128xi32>
    %c1_i32 = arith.constant 1 : i32
    %12 = arith.muli %arg1, %c1_i32 : i32
    %13 = arith.addi %12, %arg2 : i32
    %c128_i32 = arith.constant 128 : i32
    %14 = arith.muli %13, %c128_i32 : i32
    %15 = vector.broadcast %14 : i32 to vector<1x128xi32>
    %16 = arith.addi %15, %11 : vector<1x128xi32>
    %c256_i32 = arith.constant 256 : i32
    %17 = vector.broadcast %c256_i32 : i32 to vector<1x128xi32>
    %18 = arith.cmpi slt, %16, %17 : vector<1x128xi32>
    %cst_4 = arith.constant 0.000000e+00 : f32
    %19 = vector.broadcast %cst_4 : f32 to vector<1x128xf32>
    %20 = arith.select %18, %10, %19 : vector<1x128xi1>, vector<1x128xf32>
    %cst_5 = arith.constant 9.99999997E-7 : f32
    %21 = vector.broadcast %cst_5 : f32 to vector<3x128xf32>
    %22 = arith.addf %4, %21 : vector<3x128xf32>
    %23 = math.log %22 : vector<3x128xf32>
    %cst_6 = arith.constant 5.000000e+01 : f32
    %24 = vector.broadcast %cst_6 : f32 to vector<3x128xf32>
    %25 = arith.mulf %23, %24 : vector<3x128xf32>
    %26 = vector.extract_strided_slice %25 {offsets = [0, 0], sizes = [1, 128], strides = [1, 1]} : vector<3x128xf32> to vector<1x128xf32>
    %27 = vector.extract_strided_slice %25 {offsets = [1, 0], sizes = [2, 128], strides = [1, 1]} : vector<3x128xf32> to vector<2x128xf32>
    %28 = vector.broadcast %26 : vector<1x128xf32> to vector<2x128xf32>
    %29 = arith.subf %28, %27 : vector<2x128xf32>
    %30 = vector.shape_cast %29 : vector<2x128xf32> to vector<2x1x128xf32>
    %31 = vector.extract_strided_slice %25 {offsets = [0, 0], sizes = [2, 128], strides = [1, 1]} : vector<3x128xf32> to vector<2x128xf32>
    %32 = vector.extract_strided_slice %25 {offsets = [2, 0], sizes = [1, 128], strides = [1, 1]} : vector<3x128xf32> to vector<1x128xf32>
    %33 = vector.broadcast %32 : vector<1x128xf32> to vector<2x128xf32>
    %34 = arith.subf %31, %33 : vector<2x128xf32>
    %35 = vector.shape_cast %34 : vector<2x128xf32> to vector<2x1x128xf32>
    %36 = tpu.iota {dimensions = array<i32: 1>} : vector<1x64x1xi32>
    %37 = arith.sitofp %36 : vector<1x64x1xi32> to vector<1x64x1xf32>
    %cst_7 = arith.constant 3.150000e+01 : f32
    %38 = vector.broadcast %cst_7 : f32 to vector<1x64x1xf32>
    %39 = arith.subf %37, %38 : vector<1x64x1xf32>
    %cst_8 = arith.constant 4.76190472 : f32
    %40 = vector.broadcast %cst_8 : f32 to vector<1x64x1xf32>
    %41 = arith.mulf %39, %40 : vector<1x64x1xf32>
    %42 = vector.broadcast %30 : vector<2x1x128xf32> to vector<2x64x128xf32>
    %43 = vector.broadcast %41 : vector<1x64x1xf32> to vector<2x64x128xf32>
    %44 = arith.subf %42, %43 : vector<2x64x128xf32>
    %45 = arith.mulf %44, %44 : vector<2x64x128xf32>
    %cst_9 = arith.constant 1.000000e+00 : f32
    %46 = vector.broadcast %cst_9 : f32 to vector<2x64x128xf32>
    %47 = arith.addf %46, %45 : vector<2x64x128xf32>
    %48 = tpu.reciprocal %47 {approx = true} : vector<2x64x128xf32> -> vector<2x64x128xf32>
    %49 = vector.shape_cast %20 : vector<1x128xf32> to vector<1x1x128xf32>
    %50 = vector.broadcast %49 : vector<1x1x128xf32> to vector<2x64x128xf32>
    %51 = arith.mulf %48, %50 : vector<2x64x128xf32>
    %52 = vector.shape_cast %51 : vector<2x64x128xf32> to vector<128x128xf32>
    %53 = arith.truncf %52 : vector<128x128xf32> to vector<128x128xbf16>
    %54 = vector.broadcast %35 : vector<2x1x128xf32> to vector<2x64x128xf32>
    %55 = vector.broadcast %41 : vector<1x64x1xf32> to vector<2x64x128xf32>
    %56 = arith.subf %54, %55 : vector<2x64x128xf32>
    %57 = arith.mulf %56, %56 : vector<2x64x128xf32>
    %cst_10 = arith.constant 1.000000e+00 : f32
    %58 = vector.broadcast %cst_10 : f32 to vector<2x64x128xf32>
    %59 = arith.addf %58, %57 : vector<2x64x128xf32>
    %60 = tpu.reciprocal %59 {approx = true} : vector<2x64x128xf32> -> vector<2x64x128xf32>
    %61 = vector.shape_cast %60 : vector<2x64x128xf32> to vector<128x128xf32>
    %62 = arith.truncf %61 : vector<128x128xf32> to vector<128x128xbf16>
    %c0_11 = arith.constant 0 : index
    %c0_12 = arith.constant 0 : index
    %63 = vector.load %arg5[%c0_11, %c0_12] : memref<128x128xf32, #tpu.memory_space<vmem>>, vector<128x128xf32>
    %cst_13 = arith.constant dense<0.000000e+00> : vector<128x128xf32>
    %64 = tpu.matmul %53, %62, %cst_13 {dimension_numbers = #tpu.dot_dimension_numbers<[1], [1], [0], [0], [0, 0, 1, 0], [], []>} : vector<128x128xbf16>, vector<128x128xbf16>, vector<128x128xf32> -> vector<128x128xf32>
    %65 = arith.addf %63, %64 : vector<128x128xf32>
    %c0_14 = arith.constant 0 : index
    %c0_15 = arith.constant 0 : index
    %66 = vector.load %arg5[%c0_14, %c0_15] : memref<128x128xf32, #tpu.memory_space<vmem>>, vector<128x128xf32>
    tpu.vector_store %arg5[%c0_14, %c0_15], %65 {strides = array<i32>} : memref<128x128xf32, #tpu.memory_space<vmem>>, vector<128x128xf32>,
    %c0_i32_16 = arith.constant 0 : i32
    %67 = arith.cmpi eq, %arg2, %c0_i32_16 : i32
    %68 = arith.extui %67 : i1 to i32
    %c0_i32_17 = arith.constant 0 : i32
    %69 = arith.cmpi ne, %68, %c0_i32_17 : i32
    scf.if %69 {
      %c0_18 = arith.constant 0 : index
      %c0_19 = arith.constant 0 : index
      %70 = vector.load %arg5[%c0_18, %c0_19] : memref<128x128xf32, #tpu.memory_space<vmem>>, vector<128x128xf32>
      %71 = vector.extract_strided_slice %70 {offsets = [0, 0], sizes = [64, 64], strides = [1, 1]} : vector<128x128xf32> to vector<64x64xf32>
      %72 = vector.extract_strided_slice %70 {offsets = [0, 64], sizes = [64, 64], strides = [1, 1]} : vector<128x128xf32> to vector<64x64xf32>
      %73 = vector.extract_strided_slice %70 {offsets = [64, 64], sizes = [64, 64], strides = [1, 1]} : vector<128x128xf32> to vector<64x64xf32>
      %74 = tpu.iota {dimensions = array<i32: 0>} : vector<64x64xi32>
      %75 = tpu.iota {dimensions = array<i32: 1>} : vector<64x64xi32>
      %76 = arith.addi %74, %75 : vector<64x64xi32>
      %c63_i32 = arith.constant 63 : i32
      %77 = vector.broadcast %c63_i32 : i32 to vector<64x64xi32>
      %78 = arith.cmpi eq, %76, %77 : vector<64x64xi32>
      %79 = arith.extui %78 : vector<64x64xi1> to vector<64x64xi32>
      %80 = arith.sitofp %79 : vector<64x64xi32> to vector<64x64xf32>
      %cst_20 = arith.constant dense<0.000000e+00> : vector<64x64xf32>
      %81 = tpu.matmul %80, %72, %cst_20 {dimension_numbers = #tpu.dot_dimension_numbers<[1], [0], [0], [1], [0, 0, 1, 1], [], []>} : vector<64x64xf32>, vector<64x64xf32>, vector<64x64xf32> -> vector<64x64xf32>
      %cst_21 = arith.constant dense<0.000000e+00> : vector<64x64xf32>
      %82 = tpu.matmul %80, %73, %cst_21 {dimension_numbers = #tpu.dot_dimension_numbers<[1], [0], [0], [1], [0, 0, 1, 1], [], []>} : vector<64x64xf32>, vector<64x64xf32>, vector<64x64xf32> -> vector<64x64xf32>
      %cst_22 = arith.constant dense<0.000000e+00> : vector<64x64xf32>
      %83 = tpu.matmul %82, %80, %cst_22 {dimension_numbers = #tpu.dot_dimension_numbers<[1], [0], [0], [1], [0, 0, 1, 1], [], []>} : vector<64x64xf32>, vector<64x64xf32>, vector<64x64xf32> -> vector<64x64xf32>
      %c0_23 = arith.constant 0 : index
      %c0_24 = arith.constant 0 : index
      %c0_25 = arith.constant 0 : index
      %c0_26 = arith.constant 0 : index
      %c0_27 = arith.constant 0 : index
      %84 = vector.load %arg4[%c0_23, %c0_24, %c0_25, %c0_26, %c0_27] : memref<1x1x3x64x64xf32, #tpu.memory_space<vmem>>, vector<1x1x1x64x64xf32>
      %85 = vector.shape_cast %84 : vector<1x1x1x64x64xf32> to vector<64x64xf32>
      %86 = vector.shape_cast %71 : vector<64x64xf32> to vector<1x1x1x64x64xf32>
      tpu.vector_store %arg4[%c0_23, %c0_24, %c0_25, %c0_26, %c0_27], %86 {strides = array<i32>} : memref<1x1x3x64x64xf32, #tpu.memory_space<vmem>>, vector<1x1x1x64x64xf32>,
      %c0_28 = arith.constant 0 : index
      %c0_29 = arith.constant 0 : index
      %c1 = arith.constant 1 : index
      %c0_30 = arith.constant 0 : index
      %c0_31 = arith.constant 0 : index
      %87 = vector.load %arg4[%c0_28, %c0_29, %c1, %c0_30, %c0_31] : memref<1x1x3x64x64xf32, #tpu.memory_space<vmem>>, vector<1x1x1x64x64xf32>
      %88 = vector.shape_cast %87 : vector<1x1x1x64x64xf32> to vector<64x64xf32>
      %89 = vector.shape_cast %81 : vector<64x64xf32> to vector<1x1x1x64x64xf32>
      tpu.vector_store %arg4[%c0_28, %c0_29, %c1, %c0_30, %c0_31], %89 {strides = array<i32>} : memref<1x1x3x64x64xf32, #tpu.memory_space<vmem>>, vector<1x1x1x64x64xf32>,
      %c0_32 = arith.constant 0 : index
      %c0_33 = arith.constant 0 : index
      %c2 = arith.constant 2 : index
      %c0_34 = arith.constant 0 : index
      %c0_35 = arith.constant 0 : index
      %90 = vector.load %arg4[%c0_32, %c0_33, %c2, %c0_34, %c0_35] : memref<1x1x3x64x64xf32, #tpu.memory_space<vmem>>, vector<1x1x1x64x64xf32>
      %91 = vector.shape_cast %90 : vector<1x1x1x64x64xf32> to vector<64x64xf32>
      %92 = vector.shape_cast %83 : vector<64x64xf32> to vector<1x1x1x64x64xf32>
      tpu.vector_store %arg4[%c0_32, %c0_33, %c2, %c0_34, %c0_35], %92 {strides = array<i32>} : memref<1x1x3x64x64xf32, #tpu.memory_space<vmem>>, vector<1x1x1x64x64xf32>,
    } else {
    }
    return
  }
  func.func @transform_0(%arg0: i32, %arg1: i32, %arg2: i32) -> (i32, i32, i32) {
    %c1_i32 = arith.constant 1 : i32
    %0 = arith.muli %arg1, %c1_i32 : i32
    %1 = arith.addi %0, %arg2 : i32
    %c0_i32 = arith.constant 0 : i32
    %c0_i32_0 = arith.constant 0 : i32
    return %arg0, %c0_i32, %1 : i32, i32, i32
  }
  func.func @transform_1(%arg0: i32, %arg1: i32, %arg2: i32) -> (i32, i32, i32, i32, i32) {
    %c0_i32 = arith.constant 0 : i32
    %c0_i32_0 = arith.constant 0 : i32
    %c0_i32_1 = arith.constant 0 : i32
    %c0_i32_2 = arith.constant 0 : i32
    return %arg0, %arg1, %c0_i32, %c0_i32_0, %c0_i32_1 : i32, i32, i32, i32, i32
  }
}

</mosaic_0001>

<llo_original>
// kernel: tpu_custom_call.1
$region0: #{tpu_custom_call.1}
  #allocation0 [shape = 'u32[]', space=smem, size = 0x4, offset = 0x4, fixed_abs, tag = 'smem constant byte address 0x4 - core index']
  #allocation1 [shape = 'u32[72,128]{1,0:T(1,128)}', space=vmem, size = 0x9000, scoped, tag = 'internal scratch']
  #allocation2 [shape = 'f32[128,128]{1,0:T(8,128)}', space=vmem, size = 0x10000, scoped, tag = 'scratch operand']
  %s0 = inlined_call_operand.vmem [shape: f32[2,3,256], index: 0, kind: input, shape index: {}]
  %s1 = inlined_call_operand.hbm [shape: f32[2,2,3,64,64], index: 1, kind: output, shape index: {}]
  %s2 = sld [smem:[#allocation0]]
  $region45: #{tpu_custom_call.1} parent=0
    _
  %s4 = ssub.s32 1, %s2
  %s5 = scalar_select 0, %s4, %s2
  $region1: #{tpu_custom_call.1} parent=0
    #allocation3 [shape = 'u8[196608]{0}', space=vmem, size = 0x30000, scoped, tag = 'output window, operand 0']
    #allocation4 [shape = 's32[2]{0}', space=sflag, size = 0x8, scoped, tag = 'scoped memory for tpu_custom_call.1']
    %6 = vsyncpa [#allocation4], 0
    %s7 = scalar_lea.sflag [#allocation4], 1
    %8 = vsyncpa %s7, 0
    loop: start=0, step=1, limit=6
    $region2: #{tpu_custom_call.1} parent=1 // loop_pre_header
      _
    $region3: #{tpu_custom_call.1} parent=1 // loop_header
      %s10 = sphi 0, %s14
      %p11 = scmp.ge.s32.totalorder %s10, 6
      %s17 = sphi 0, %s36
      %s18 = sphi 0, %s32
      %s19 = sphi 0, %s28
      %s20 = sphi 0, %s17
      %s21 = sphi 0, %s18
      %s22 = sphi 0, %s19
      %s23 = sphi 0, %s20
      %s24 = sphi 0, %s21
      %s25 = sphi 0, %s22
      %s43 = sphi 0, %s45
      %s46 = sphi 0, %s43
      %s47 = sphi 0, %s46
      %s63 = sphi 0, %s47
      %s71 = sphi 0, %s73
      %s74 = sphi 0, %s71
      %s75 = sphi 0, %s74
      %s91 = sphi 0, %s75
    $region4: #{tpu_custom_call.1} parent=1 // loop_header_branch
      %13 = sbr.rel (%p11) target = $region8
    $region5: #{tpu_custom_call.1} parent=1 // loop_body
      %s15 = ssub.s32 %s10, 1
      %s16 = ssub.s32 %s10, 2
      %s26 = sadd.s32 1, %s19
      %p27 = scmp.ge.s32.totalorder %s26, 1
      %s28 = scalar_select %p27, 0, %s26
      %s29 = sadd.s32 1, %s18
      %s30 = scalar_select %p27, %s29, %s18
      %p31 = scmp.ge.s32.totalorder %s30, 2
      %s32 = scalar_select %p31, 0, %s30
      %s33 = sadd.s32 1, %s17
      %s34 = scalar_select %p31, %s33, %s17
      %p35 = scmp.ge.s32.totalorder %s34, 2
      %s36 = scalar_select %p35, 0, %s34
      %s37 = sadd.s32 %s18, %s19
      %s38 = sadd.s32 %s32, %s28
      %s39 = ssub.s32 %s17, %s36
      %s40 = ssub.s32 %s37, %s38
      %s41 = sor.u32 %s39, %s40
      %p42 = scmp.eq.s32.totalorder %s41, 0
      %s44 = sadd.s32 %s43, 1
      %s45 = scalar_select %p42, %s43, %s44
      %p48 = pneg %p42
      %p49 = scmp.eq.s32.totalorder %s10, 3
      %p50 = por %p48, %p49
      %p51 = scmp.ne.s32.totalorder %s43, %s46
      %p52 = scmp.eq.s32.totalorder %s10, 0
      %p53 = por %p51, %p52
      %p54 = scmp.ne.s32.totalorder %s43, %s46
      %p55 = scmp.eq.s32.totalorder %s15, 3
      %p56 = por %p54, %p55
      %p57 = scmp.ne.s32.totalorder %s46, %s47
      %p58 = scmp.eq.s32.totalorder %s15, 0
      %p59 = por %p57, %p58
      %p60 = scmp.ne.s32.totalorder %s46, %s47
      %p61 = scmp.eq.s32.totalorder %s16, 3
      %p62 = por %p60, %p61
      %p64 = scmp.ne.s32.totalorder %s47, %s63
      %p65 = scmp.eq.s32.totalorder %s16, 0
      %p66 = por %p64, %p65
      %s67 = ssub.s32 %s17, %s36
      %s68 = ssub.s32 %s18, %s32
      %s69 = sor.u32 %s67, %s68
      %p70 = scmp.eq.s32.totalorder %s69, 0
      %s72 = sadd.s32 %s71, 1
      %s73 = scalar_select %p70, %s71, %s72
      %p76 = pneg %p70
      %p77 = scmp.eq.s32.totalorder %s10, 3
      %p78 = por %p76, %p77
      %p79 = scmp.ne.s32.totalorder %s71, %s74
      %p80 = scmp.eq.s32.totalorder %s10, 0
      %p81 = por %p79, %p80
      %p82 = scmp.ne.s32.totalorder %s71, %s74
      %p83 = scmp.eq.s32.totalorder %s15, 3
      %p84 = por %p82, %p83
      %p85 = scmp.ne.s32.totalorder %s74, %s75
      %p86 = scmp.eq.s32.totalorder %s15, 0
      %p87 = por %p85, %p86
      %p88 = scmp.ne.s32.totalorder %s74, %s75
      %p89 = scmp.eq.s32.totalorder %s16, 3
      %p90 = por %p88, %p89
      %p92 = scmp.ne.s32.totalorder %s75, %s91
      %p93 = scmp.eq.s32.totalorder %s16, 0
      %p94 = por %p92, %p93
      %p95 = scmp.le.s32.totalorder 1, %s10
      %p96 = scmp.lt.s32.totalorder %s10, 5
      %p97 = pnand %p95, %p96
      %p98 = pneg %p97
      // Predicated region
      $region9: #{tpu_custom_call.1} parent=5 // pred_check
        _
      $region10: #{tpu_custom_call.1} parent=5 // pred_check_branch
        %100 = sbr.rel (%p97) target = $region12
      $region11: #{tpu_custom_call.1} parent=5 // pred_region
        %s101 = ssub.s32 %s10, 1
      $region12: #{tpu_custom_call.1} parent=5 // pred_fallthru
        _
      %p102 = scmp.lt.s32.totalorder %s10, 4
      // Predicated region
      $region13: #{tpu_custom_call.1} parent=5 // pred_check
        %p103 = pneg %p102
      $region14: #{tpu_custom_call.1} parent=5 // pred_check_branch
        %105 = sbr.rel (%p103) target = $region16
      $region15: #{tpu_custom_call.1} parent=5 // pred_region
        // Predicated region
        $region17: #{tpu_custom_call.1} parent=15 // pred_check
          %p106 = pneg %p53
        $region18: #{tpu_custom_call.1} parent=15 // pred_check_branch
          %108 = sbr.rel (%p106) target = $region20
        $region19: #{tpu_custom_call.1} parent=15 // pred_region
          %s109 = sadd.s32 %s18, %s19
          %p110 = scmp.lt.s32.totalorder %s17, 1
          %s111 = scalar_select %p110, %s17, 1
          %p112 = scmp.lt.s32.totalorder %s109, 1
          %s113 = scalar_select %p112, %s109, 1
          %s114 = smul.addr %s111, 2
          %s115 = sadd.s32 %s113, %s114
          %s116 = smul.addr %s115, 4
          %s117 = scalar_lea.vmem %s0, %s116
          %s118 = sadd.s32 %s18, %s19
        $region20: #{tpu_custom_call.1} parent=15 // pred_fallthru
          _
      $region16: #{tpu_custom_call.1} parent=5 // pred_fallthru
        _
      %p119 = scmp.le.s32.totalorder 1, %s10
      %p120 = scmp.lt.s32.totalorder %s10, 5
      %p121 = pnand %p119, %p120
      %p122 = pneg %p121
      // Predicated region
      $region21: #{tpu_custom_call.1} parent=5 // pred_check
        _
      $region22: #{tpu_custom_call.1} parent=5 // pred_check_branch
        %124 = sbr.rel (%p121) target = $region24
      $region23: #{tpu_custom_call.1} parent=5 // pred_region
        %s125 = ssub.s32 %s10, 1
        %s126 = sadd.s32 %s21, %s22
        %p127 = scmp.lt.s32.totalorder %s20, 1
        %s128 = scalar_select %p127, %s20, 1
        %p129 = scmp.lt.s32.totalorder %s126, 1
        %s130 = scalar_select %p129, %s126, 1
        %s131 = smul.addr %s128, 2
        %s132 = sadd.s32 %s130, %s131
        %s133 = smul.addr %s132, 4
        %s134 = scalar_lea.vmem %s0, %s133
        %p135 = pneg %p59
        %p136 = pneg %p56
        %p137 = pneg %p87
        %p138 = pneg %p84
        %s139 = sand.u32 %s74, 1
        %s140 = scalar_lea.sflag [#allocation4], %s139
        %s141 = sand.u32 %s74, 1
        %s142 = smul.addr %s141, 192
        %s143 = scalar_lea.vmem [#allocation3], %s142
        %s144 = sadd.s32 %s21, %s22
        %p145 = scmp.lt.s32.totalorder %s20, 1
        %s146 = scalar_select %p145, %s20, 1
        %p147 = scmp.lt.s32.totalorder %s144, 1
        %s148 = scalar_select %p147, %s144, 1
        %s149 = smul.addr %s146, 2
        %s150 = sadd.s32 %s148, %s149
        %s151 = smul.addr %s150, 4
        %s152 = scalar_lea.vmem %s0, %s151
        %s153 = sadd.s32 %s21, %s22
        %p154 = scmp.eq.s32.totalorder %s22, 0
        // Predicated region
        $region25: #{tpu_custom_call.1} parent=23 // pred_check
          %p155 = pneg %p154
        $region26: #{tpu_custom_call.1} parent=23 // pred_check_branch
          %157 = sbr.rel (%p155) target = $region28
        $region27: #{tpu_custom_call.1} parent=23 // pred_region
          %158 = vst [vmem:[#allocation2] sm:$0xff] 0.0
          %159 = vst [vmem:[#allocation2 + $0x8] sm:$0xff] 0.0
          %160 = vst [vmem:[#allocation2 + $0x10] sm:$0xff] 0.0
          %161 = vst [vmem:[#allocation2 + $0x18] sm:$0xff] 0.0
          %162 = vst [vmem:[#allocation2 + $0x20] sm:$0xff] 0.0
          %163 = vst [vmem:[#allocation2 + $0x28] sm:$0xff] 0.0
          %164 = vst [vmem:[#allocation2 + $0x30] sm:$0xff] 0.0
          %165 = vst [vmem:[#allocation2 + $0x38] sm:$0xff] 0.0
          %166 = vst [vmem:[#allocation2 + $0x40] sm:$0xff] 0.0
          %167 = vst [vmem:[#allocation2 + $0x48] sm:$0xff] 0.0
          %168 = vst [vmem:[#allocation2 + $0x50] sm:$0xff] 0.0
          %169 = vst [vmem:[#allocation2 + $0x58] sm:$0xff] 0.0
          %170 = vst [vmem:[#allocation2 + $0x60] sm:$0xff] 0.0
          %171 = vst [vmem:[#allocation2 + $0x68] sm:$0xff] 0.0
          %172 = vst [vmem:[#allocation2 + $0x70] sm:$0xff] 0.0
          %173 = vst [vmem:[#allocation2 + $0x78] sm:$0xff] 0.0
        $region28: #{tpu_custom_call.1} parent=23 // pred_fallthru
          _
        %v174 = vld [vmem:[%s152] sm:$0x7]
        %v175 = vmul.f32 %v174, %v174
        %vm176 = vcmask 1042432
        %v177 = vsel %vm176, %v175, 0.0
        %v178 = vrot.slane %v177, 4
        %v179 = vadd.f32 %v177, %v178
        %v180 = vrot.slane %v179, 2
        %v181 = vadd.f32 %v179, %v180
        %v182 = vrot.slane %v181, 1
        %v183 = vadd.f32 %v181, %v182
        %v184 = vadd.f32 %v183, 1e-06
        %v185 = vrsqrt.pop %v184
        %v186 = vmul.f32 %v185, %v184
        %v187 = vmul.f32 %v186, %v185
        %v188 = vmul.f32 0.5, %v187
        %v189 = vsub.f32 1.5, %v188
        %v190 = vmul.f32 %v185, %v189
        %v191 = vmul.f32 %v184, %v190
        %vm192 = vcmp.eq.f32.partialorder %v184, inf
        %v193 = vsel %vm192, %v184, %v191
        %vm194 = vcmp.eq.f32.partialorder %v184, 0.0
        %v195 = vand.u32 %v184, 2147483648
        %v196 = vsel %vm194, %v195, %v193
        %v197 = vlaneseq
        %v198 = vand.u32 %v197, 127
        %s199 = sadd.s32 %s21, %s22
        %s200 = smul.u32 %s199, 128
        %v201 = vstv %s200
        %v202 = vadd.s32 %v201, %v198
        %vm203 = vcmp.lt.s32.totalorder %v202, 256
        %v204 = vsel %vm203, %v196, 0.0
        %v205 = vadd.f32 %v174, 1e-06
        %v206 = vlog2.pop %v205
        %v207 = vmul.f32 %v206, 0.6931472
        %v208 = vmul.f32 %v207, 50.0
        %v209 = vperm.slane %v208, 0
        %v210 = vsub.f32 %v209, %v208
        %212 = vst [vmem:[#allocation1] sm:$0xff] %v210
        %s213 = scalar_lea.vmem [#allocation1], 1
        %v214 = vld [vmem:[%s213] ss:$9 sm:$0xff]
        %s215 = scalar_lea.vmem [#allocation1], 2
        %v216 = vld [vmem:[%s215] ss:$9 sm:$0xff]
        %v217 = vperm.slane %v208, 2
        %v218 = vsub.f32 %v208, %v217
        %v220 = vrot.slane %v218, 1
        %v221 = vlaneseq
        %v222 = vshrl.u32 %v221, 7
        %v223 = vadd.s32 %v222, 8
        %v224 = vadd.s32 %v222, 16
        %v225 = vadd.s32 %v222, 24
        %v226 = vadd.s32 %v222, 32
        %v227 = vadd.s32 %v222, 40
        %v228 = vadd.s32 %v222, 48
        %v229 = vadd.s32 %v222, 56
        %v230 = vcvt.s32.f32 %v222
        %v231 = vcvt.s32.f32 %v223
        %v232 = vcvt.s32.f32 %v224
        %v233 = vcvt.s32.f32 %v225
        %v234 = vcvt.s32.f32 %v226
        %v235 = vcvt.s32.f32 %v227
        %v236 = vcvt.s32.f32 %v228
        %v237 = vcvt.s32.f32 %v229
        %v238 = vsub.f32 %v230, 31.5
        %v239 = vsub.f32 %v231, 31.5
        %v240 = vsub.f32 %v232, 31.5
        %v241 = vsub.f32 %v233, 31.5
        %v242 = vsub.f32 %v234, 31.5
        %v243 = vsub.f32 %v235, 31.5
        %v244 = vsub.f32 %v236, 31.5
        %v245 = vsub.f32 %v237, 31.5
        %v246 = vmul.f32 %v238, 4.7619047
        %v247 = vmul.f32 %v239, 4.7619047
        %v248 = vmul.f32 %v240, 4.7619047
        %v249 = vmul.f32 %v241, 4.7619047
        %v250 = vmul.f32 %v242, 4.7619047
        %v251 = vmul.f32 %v243, 4.7619047
        %v252 = vmul.f32 %v244, 4.7619047
        %v253 = vmul.f32 %v245, 4.7619047
        %v254 = vperm.slane %v214, 0
        %v255 = vperm.slane %v216, 0
        %v258 = vsub.f32 %v254, %v246
        %v259 = vsub.f32 %v254, %v247
        %v260 = vsub.f32 %v254, %v248
        %v261 = vsub.f32 %v254, %v249
        %v262 = vsub.f32 %v254, %v250
        %v263 = vsub.f32 %v254, %v251
        %v264 = vsub.f32 %v254, %v252
        %v265 = vsub.f32 %v254, %v253
        %v266 = vsub.f32 %v255, %v246
        %v267 = vsub.f32 %v255, %v247
        %v268 = vsub.f32 %v255, %v248
        %v269 = vsub.f32 %v255, %v249
        %v270 = vsub.f32 %v255, %v250
        %v271 = vsub.f32 %v255, %v251
        %v272 = vsub.f32 %v255, %v252
        %v273 = vsub.f32 %v255, %v253
        %v274 = vmul.f32 %v258, %v258
        %v275 = vmul.f32 %v259, %v259
        %v276 = vmul.f32 %v260, %v260
        %v277 = vmul.f32 %v261, %v261
        %v278 = vmul.f32 %v262, %v262
        %v279 = vmul.f32 %v263, %v263
        %v280 = vmul.f32 %v264, %v264
        %v281 = vmul.f32 %v265, %v265
        %v282 = vmul.f32 %v266, %v266
        %v283 = vmul.f32 %v267, %v267
        %v284 = vmul.f32 %v268, %v268
        %v285 = vmul.f32 %v269, %v269
        %v286 = vmul.f32 %v270, %v270
        %v287 = vmul.f32 %v271, %v271
        %v288 = vmul.f32 %v272, %v272
        %v289 = vmul.f32 %v273, %v273
        %v290 = vadd.f32 %v274, 1.0
        %v291 = vadd.f32 %v275, 1.0
        %v292 = vadd.f32 %v276, 1.0
        %v293 = vadd.f32 %v277, 1.0
        %v294 = vadd.f32 %v278, 1.0
        %v295 = vadd.f32 %v279, 1.0
        %v296 = vadd.f32 %v280, 1.0
        %v297 = vadd.f32 %v281, 1.0
        %v298 = vadd.f32 %v282, 1.0
        %v299 = vadd.f32 %v283, 1.0
        %v300 = vadd.f32 %v284, 1.0
        %v301 = vadd.f32 %v285, 1.0
        %v302 = vadd.f32 %v286, 1.0
        %v303 = vadd.f32 %v287, 1.0
        %v304 = vadd.f32 %v288, 1.0
        %v305 = vadd.f32 %v289, 1.0
        %v306 = vrcp.pop %v290
        %v307 = vrcp.pop %v291
        %v308 = vrcp.pop %v292
        %v309 = vrcp.pop %v293
        %v310 = vrcp.pop %v294
        %v311 = vrcp.pop %v295
        %v312 = vrcp.pop %v296
        %v313 = vrcp.pop %v297
        %v314 = vrcp.pop %v298
        %v315 = vrcp.pop %v299
        %v316 = vrcp.pop %v300
        %v317 = vrcp.pop %v301
        %v318 = vrcp.pop %v302
        %v319 = vrcp.pop %v303
        %v320 = vrcp.pop %v304
        %v321 = vrcp.pop %v305
        %v322 = vmul.f32 %v306, %v204
        %v323 = vmul.f32 %v307, %v204
        %v324 = vmul.f32 %v308, %v204
        %v325 = vmul.f32 %v309, %v204
        %v326 = vmul.f32 %v310, %v204
        %v327 = vmul.f32 %v311, %v204
        %v328 = vmul.f32 %v312, %v204
        %v329 = vmul.f32 %v313, %v204
        %v330 = vmul.f32 %v314, %v204
        %v331 = vmul.f32 %v315, %v204
        %v332 = vmul.f32 %v316, %v204
        %v333 = vmul.f32 %v317, %v204
        %v334 = vmul.f32 %v318, %v204
        %v335 = vmul.f32 %v319, %v204
        %v336 = vmul.f32 %v320, %v204
        %v337 = vmul.f32 %v321, %v204
        %v338 = vpack.c.bf16 %v323, %v322
        %v339 = vpack.c.bf16 %v325, %v324
        %v340 = vpack.c.bf16 %v327, %v326
        %v341 = vpack.c.bf16 %v329, %v328
        %v342 = vpack.c.bf16 %v331, %v330
        %v343 = vpack.c.bf16 %v333, %v332
        %v344 = vpack.c.bf16 %v335, %v334
        %v345 = vpack.c.bf16 %v337, %v336
        %v346 = vperm.slane %v218, 0
        %v347 = vperm.slane %v220, 0
        %v350 = vsub.f32 %v346, %v246
        %v351 = vsub.f32 %v346, %v247
        %v352 = vsub.f32 %v346, %v248
        %v353 = vsub.f32 %v346, %v249
        %v354 = vsub.f32 %v346, %v250
        %v355 = vsub.f32 %v346, %v251
        %v356 = vsub.f32 %v346, %v252
        %v357 = vsub.f32 %v346, %v253
        %v358 = vsub.f32 %v347, %v246
        %v359 = vsub.f32 %v347, %v247
        %v360 = vsub.f32 %v347, %v248
        %v361 = vsub.f32 %v347, %v249
        %v362 = vsub.f32 %v347, %v250
        %v363 = vsub.f32 %v347, %v251
        %v364 = vsub.f32 %v347, %v252
        %v365 = vsub.f32 %v347, %v253
        %v366 = vmul.f32 %v350, %v350
        %v367 = vmul.f32 %v351, %v351
        %v368 = vmul.f32 %v352, %v352
        %v369 = vmul.f32 %v353, %v353
        %v370 = vmul.f32 %v354, %v354
        %v371 = vmul.f32 %v355, %v355
        %v372 = vmul.f32 %v356, %v356
        %v373 = vmul.f32 %v357, %v357
        %v374 = vmul.f32 %v358, %v358
        %v375 = vmul.f32 %v359, %v359
        %v376 = vmul.f32 %v360, %v360
        %v377 = vmul.f32 %v361, %v361
        %v378 = vmul.f32 %v362, %v362
        %v379 = vmul.f32 %v363, %v363
        %v380 = vmul.f32 %v364, %v364
        %v381 = vmul.f32 %v365, %v365
        %v382 = vadd.f32 %v366, 1.0
        %v383 = vadd.f32 %v367, 1.0
        %v384 = vadd.f32 %v368, 1.0
        %v385 = vadd.f32 %v369, 1.0
        %v386 = vadd.f32 %v370, 1.0
        %v387 = vadd.f32 %v371, 1.0
        %v388 = vadd.f32 %v372, 1.0
        %v389 = vadd.f32 %v373, 1.0
        %v390 = vadd.f32 %v374, 1.0
        %v391 = vadd.f32 %v375, 1.0
        %v392 = vadd.f32 %v376, 1.0
        %v393 = vadd.f32 %v377, 1.0
        %v394 = vadd.f32 %v378, 1.0
        %v395 = vadd.f32 %v379, 1.0
        %v396 = vadd.f32 %v380, 1.0
        %v397 = vadd.f32 %v381, 1.0
        %v398 = vrcp.pop %v382
        %v399 = vrcp.pop %v383
        %v400 = vrcp.pop %v384
        %v401 = vrcp.pop %v385
        %v402 = vrcp.pop %v386
        %v403 = vrcp.pop %v387
        %v404 = vrcp.pop %v388
        %v405 = vrcp.pop %v389
        %v406 = vrcp.pop %v390
        %v407 = vrcp.pop %v391
        %v408 = vrcp.pop %v392
        %v409 = vrcp.pop %v393
        %v410 = vrcp.pop %v394
        %v411 = vrcp.pop %v395
        %v412 = vrcp.pop %v396
        %v413 = vrcp.pop %v397
        %v414 = vpack.c.bf16 %v399, %v398
        %v415 = vpack.c.bf16 %v401, %v400
        %v416 = vpack.c.bf16 %v403, %v402
        %v417 = vpack.c.bf16 %v405, %v404
        %v418 = vpack.c.bf16 %v407, %v406
        %v419 = vpack.c.bf16 %v409, %v408
        %v420 = vpack.c.bf16 %v411, %v410
        %v421 = vpack.c.bf16 %v413, %v412
        %v422 = vld [vmem:[#allocation2] sm:$0xff]
        %v423 = vld [vmem:[#allocation2 + $0x8] sm:$0xff]
        %v424 = vld [vmem:[#allocation2 + $0x10] sm:$0xff]
        %v425 = vld [vmem:[#allocation2 + $0x18] sm:$0xff]
        %v426 = vld [vmem:[#allocation2 + $0x20] sm:$0xff]
        %v427 = vld [vmem:[#allocation2 + $0x28] sm:$0xff]
        %v428 = vld [vmem:[#allocation2 + $0x30] sm:$0xff]
        %v429 = vld [vmem:[#allocation2 + $0x38] sm:$0xff]
        %v430 = vld [vmem:[#allocation2 + $0x40] sm:$0xff]
        %v431 = vld [vmem:[#allocation2 + $0x48] sm:$0xff]
        %v432 = vld [vmem:[#allocation2 + $0x50] sm:$0xff]
        %v433 = vld [vmem:[#allocation2 + $0x58] sm:$0xff]
        %v434 = vld [vmem:[#allocation2 + $0x60] sm:$0xff]
        %v435 = vld [vmem:[#allocation2 + $0x68] sm:$0xff]
        %v436 = vld [vmem:[#allocation2 + $0x70] sm:$0xff]
        %v437 = vld [vmem:[#allocation2 + $0x78] sm:$0xff]
        %438 = vmatpush.bf16.xpose.msra.mxu0 %v421
        %439 = vmatpush.bf16.xpose.msra.mxu0 %v420
        %440 = vmatpush.bf16.xpose.msra.mxu0 %v419
        %441 = vmatpush.bf16.xpose.msra.mxu0 %v418
        %442 = vmatpush.bf16.xpose.msra.mxu0 %v417
        %443 = vmatpush.bf16.xpose.msra.mxu0 %v416
        %444 = vmatpush.bf16.xpose.msra.mxu0 %v415
        %445 = vmatpush.bf16.xpose.msra.mxu0 %v414
        %446 = vmatmul.bf16.gmra.mxu0 %v338
        %v447 = vpop.f32.mrf.mxu0
        %v448 = vadd.f32 0.0, %v447
        %v449 = vpop.f32.mrf.mxu0
        %v450 = vadd.f32 0.0, %v449
        %451 = vmatmul.bf16.gmra.mxu0 %v339
        %v452 = vpop.f32.mrf.mxu0
        %v453 = vadd.f32 0.0, %v452
        %v454 = vpop.f32.mrf.mxu0
        %v455 = vadd.f32 0.0, %v454
        %456 = vmatmul.bf16.gmra.mxu0 %v340
        %v457 = vpop.f32.mrf.mxu0
        %v458 = vadd.f32 0.0, %v457
        %v459 = vpop.f32.mrf.mxu0
        %v460 = vadd.f32 0.0, %v459
        %461 = vmatmul.bf16.gmra.mxu0 %v341
        %v462 = vpop.f32.mrf.mxu0
        %v463 = vadd.f32 0.0, %v462
        %v464 = vpop.f32.mrf.mxu0
        %v465 = vadd.f32 0.0, %v464
        %466 = vmatmul.bf16.gmra.mxu0 %v342
        %v467 = vpop.f32.mrf.mxu0
        %v468 = vadd.f32 0.0, %v467
        %v469 = vpop.f32.mrf.mxu0
        %v470 = vadd.f32 0.0, %v469
        %471 = vmatmul.bf16.gmra.mxu0 %v343
        %v472 = vpop.f32.mrf.mxu0
        %v473 = vadd.f32 0.0, %v472
        %v474 = vpop.f32.mrf.mxu0
        %v475 = vadd.f32 0.0, %v474
        %476 = vmatmul.bf16.gmra.mxu0 %v344
        %v477 = vpop.f32.mrf.mxu0
        %v478 = vadd.f32 0.0, %v477
        %v479 = vpop.f32.mrf.mxu0
        %v480 = vadd.f32 0.0, %v479
        %481 = vmatmul.bf16.gmra.mxu0 %v345
        %v482 = vpop.f32.mrf.mxu0
        %v483 = vadd.f32 0.0, %v482
        %v484 = vpop.f32.mrf.mxu0
        %v485 = vadd.f32 0.0, %v484
        %486 = vdwg.mxu0
        %v487 = vadd.f32 %v422, %v448
        %v488 = vadd.f32 %v423, %v450
        %v489 = vadd.f32 %v424, %v453
        %v490 = vadd.f32 %v425, %v455
        %v491 = vadd.f32 %v426, %v458
        %v492 = vadd.f32 %v427, %v460
        %v493 = vadd.f32 %v428, %v463
        %v494 = vadd.f32 %v429, %v465
        %v495 = vadd.f32 %v430, %v468
        %v496 = vadd.f32 %v431, %v470
        %v497 = vadd.f32 %v432, %v473
        %v498 = vadd.f32 %v433, %v475
        %v499 = vadd.f32 %v434, %v478
        %v500 = vadd.f32 %v435, %v480
        %v501 = vadd.f32 %v436, %v483
        %v502 = vadd.f32 %v437, %v485
        %503 = vst [vmem:[#allocation2] sm:$0xff] %v487
        %504 = vst [vmem:[#allocation2 + $0x8] sm:$0xff] %v488
        %505 = vst [vmem:[#allocation2 + $0x10] sm:$0xff] %v489
        %506 = vst [vmem:[#allocation2 + $0x18] sm:$0xff] %v490
        %507 = vst [vmem:[#allocation2 + $0x20] sm:$0xff] %v491
        %508 = vst [vmem:[#allocation2 + $0x28] sm:$0xff] %v492
        %509 = vst [vmem:[#allocation2 + $0x30] sm:$0xff] %v493
        %510 = vst [vmem:[#allocation2 + $0x38] sm:$0xff] %v494
        %511 = vst [vmem:[#allocation2 + $0x40] sm:$0xff] %v495
        %512 = vst [vmem:[#allocation2 + $0x48] sm:$0xff] %v496
        %513 = vst [vmem:[#allocation2 + $0x50] sm:$0xff] %v497
        %514 = vst [vmem:[#allocation2 + $0x58] sm:$0xff] %v498
        %515 = vst [vmem:[#allocation2 + $0x60] sm:$0xff] %v499
        %516 = vst [vmem:[#allocation2 + $0x68] sm:$0xff] %v500
        %517 = vst [vmem:[#allocation2 + $0x70] sm:$0xff] %v501
        %518 = vst [vmem:[#allocation2 + $0x78] sm:$0xff] %v502
        // Predicated region
        $region29: #{tpu_custom_call.1} parent=23 // pred_check
          %p519 = pneg %p154
        $region30: #{tpu_custom_call.1} parent=23 // pred_check_branch
          %521 = sbr.rel (%p519) target = $region32
        $region31: #{tpu_custom_call.1} parent=23 // pred_region
          %v522 = vld [vmem:[#allocation2] sm:$0xff]
          %v523 = vld [vmem:[#allocation2 + $0x8] sm:$0xff]
          %v524 = vld [vmem:[#allocation2 + $0x10] sm:$0xff]
          %v525 = vld [vmem:[#allocation2 + $0x18] sm:$0xff]
          %v526 = vld [vmem:[#allocation2 + $0x20] sm:$0xff]
          %v527 = vld [vmem:[#allocation2 + $0x28] sm:$0xff]
          %v528 = vld [vmem:[#allocation2 + $0x30] sm:$0xff]
          %v529 = vld [vmem:[#allocation2 + $0x38] sm:$0xff]
          %v530 = vld [vmem:[#allocation2 + $0x40] sm:$0xff]
          %v531 = vld [vmem:[#allocation2 + $0x48] sm:$0xff]
          %v532 = vld [vmem:[#allocation2 + $0x50] sm:$0xff]
          %v533 = vld [vmem:[#allocation2 + $0x58] sm:$0xff]
          %v534 = vld [vmem:[#allocation2 + $0x60] sm:$0xff]
          %v535 = vld [vmem:[#allocation2 + $0x68] sm:$0xff]
          %v536 = vld [vmem:[#allocation2 + $0x70] sm:$0xff]
          %v537 = vld [vmem:[#allocation2 + $0x78] sm:$0xff]
          %v538 = vadd.s32 %v222, %v198
          %v539 = vadd.s32 %v223, %v198
          %v540 = vadd.s32 %v224, %v198
          %v541 = vadd.s32 %v225, %v198
          %v542 = vadd.s32 %v226, %v198
          %v543 = vadd.s32 %v227, %v198
          %v544 = vadd.s32 %v228, %v198
          %v545 = vadd.s32 %v229, %v198
          %vm546 = vcmp.eq.s32.totalorder %v538, 63
          %vm547 = vcmp.eq.s32.totalorder %v539, 63
          %vm548 = vcmp.eq.s32.totalorder %v540, 63
          %vm549 = vcmp.eq.s32.totalorder %v541, 63
          %vm550 = vcmp.eq.s32.totalorder %v542, 63
          %vm551 = vcmp.eq.s32.totalorder %v543, 63
          %vm552 = vcmp.eq.s32.totalorder %v544, 63
          %vm553 = vcmp.eq.s32.totalorder %v545, 63
          %v554 = vsel %vm546, 1, 0
          %v555 = vsel %vm547, 1, 0
          %v556 = vsel %vm548, 1, 0
          %v557 = vsel %vm549, 1, 0
          %v558 = vsel %vm550, 1, 0
          %v559 = vsel %vm551, 1, 0
          %v560 = vsel %vm552, 1, 0
          %v561 = vsel %vm553, 1, 0
          %v562 = vcvt.s32.f32 %v554
          %v563 = vcvt.s32.f32 %v555
          %v564 = vcvt.s32.f32 %v556
          %v565 = vcvt.s32.f32 %v557
          %v566 = vcvt.s32.f32 %v558
          %v567 = vcvt.s32.f32 %v559
          %v568 = vcvt.s32.f32 %v560
          %v569 = vcvt.s32.f32 %v561
          %578 = vrot.lane.b32.xlu0 %v522, 64
          %v579 = vpop.permute.xlu0 %578
          %580 = vrot.lane.b32.xlu0 %v523, 64
          %v581 = vpop.permute.xlu0 %580
          %582 = vrot.lane.b32.xlu0 %v524, 64
          %v583 = vpop.permute.xlu0 %582
          %584 = vrot.lane.b32.xlu0 %v525, 64
          %v585 = vpop.permute.xlu0 %584
          %586 = vrot.lane.b32.xlu0 %v526, 64
          %v587 = vpop.permute.xlu0 %586
          %588 = vrot.lane.b32.xlu0 %v527, 64
          %v589 = vpop.permute.xlu0 %588
          %590 = vrot.lane.b32.xlu0 %v528, 64
          %v591 = vpop.permute.xlu0 %590
          %592 = vrot.lane.b32.xlu0 %v529, 64
          %v593 = vpop.permute.xlu0 %592
          %vm602 = vcmask 523264
          %v604 = vsel %vm602, %v562, 0
          %v607 = vsel %vm602, %v563, 0
          %v610 = vsel %vm602, %v564, 0
          %v613 = vsel %vm602, %v565, 0
          %v616 = vsel %vm602, %v566, 0
          %v619 = vsel %vm602, %v567, 0
          %v622 = vsel %vm602, %v568, 0
          %v625 = vsel %vm602, %v569, 0
          %627 = vmatpush.msra.mxu0 0.0
          %628 = vmatpush.msra.mxu0 0.0
          %629 = vmatpush.msra.mxu0 0.0
          %630 = vmatpush.msra.mxu0 0.0
          %631 = vmatpush.msra.mxu0 0.0
          %632 = vmatpush.msra.mxu0 0.0
          %633 = vmatpush.msra.mxu0 0.0
          %634 = vmatpush.msra.mxu0 0.0
          %635 = vmatpush.msra.mxu0 %v593
          %636 = vmatpush.msra.mxu0 %v591
          %637 = vmatpush.msra.mxu0 %v589
          %638 = vmatpush.msra.mxu0 %v587
          %639 = vmatpush.msra.mxu0 %v585
          %640 = vmatpush.msra.mxu0 %v583
          %641 = vmatpush.msra.mxu0 %v581
          %642 = vmatpush.msra.mxu0 %v579
          %643 = vmatmul.f32.gmra.mxu0 %v604
          %v644 = vpop.f32.mrf.mxu0
          %v645 = vadd.f32 0.0, %v644
          %646 = vmatmul.f32.gmra.mxu0 %v607
          %v647 = vpop.f32.mrf.mxu0
          %v648 = vadd.f32 0.0, %v647
          %649 = vmatmul.f32.gmra.mxu0 %v610
          %v650 = vpop.f32.mrf.mxu0
          %v651 = vadd.f32 0.0, %v650
          %652 = vmatmul.f32.gmra.mxu0 %v613
          %v653 = vpop.f32.mrf.mxu0
          %v654 = vadd.f32 0.0, %v653
          %655 = vmatmul.f32.gmra.mxu0 %v616
          %v656 = vpop.f32.mrf.mxu0
          %v657 = vadd.f32 0.0, %v656
          %658 = vmatmul.f32.gmra.mxu0 %v619
          %v659 = vpop.f32.mrf.mxu0
          %v660 = vadd.f32 0.0, %v659
          %661 = vmatmul.f32.gmra.mxu0 %v622
          %v662 = vpop.f32.mrf.mxu0
          %v663 = vadd.f32 0.0, %v662
          %664 = vmatmul.f32.gmra.mxu0 %v625
          %v665 = vpop.f32.mrf.mxu0
          %v666 = vadd.f32 0.0, %v665
          %667 = vdwg.mxu0
          %676 = vrot.lane.b32.xlu0 %v530, 64
          %v677 = vpop.permute.xlu0 %676
          %678 = vrot.lane.b32.xlu0 %v531, 64
          %v679 = vpop.permute.xlu0 %678
          %680 = vrot.lane.b32.xlu0 %v532, 64
          %v681 = vpop.permute.xlu0 %680
          %682 = vrot.lane.b32.xlu0 %v533, 64
          %v683 = vpop.permute.xlu0 %682
          %684 = vrot.lane.b32.xlu0 %v534, 64
          %v685 = vpop.permute.xlu0 %684
          %686 = vrot.lane.b32.xlu0 %v535, 64
          %v687 = vpop.permute.xlu0 %686
          %688 = vrot.lane.b32.xlu0 %v536, 64
          %v689 = vpop.permute.xlu0 %688
          %690 = vrot.lane.b32.xlu0 %v537, 64
          %v691 = vpop.permute.xlu0 %690
          %700 = vmatpush.msra.mxu0 0.0
          %701 = vmatpush.msra.mxu0 0.0
          %702 = vmatpush.msra.mxu0 0.0
          %703 = vmatpush.msra.mxu0 0.0
          %704 = vmatpush.msra.mxu0 0.0
          %705 = vmatpush.msra.mxu0 0.0
          %706 = vmatpush.msra.mxu0 0.0
          %707 = vmatpush.msra.mxu0 0.0
          %708 = vmatpush.msra.mxu0 %v691
          %709 = vmatpush.msra.mxu0 %v689
          %710 = vmatpush.msra.mxu0 %v687
          %711 = vmatpush.msra.mxu0 %v685
          %712 = vmatpush.msra.mxu0 %v683
          %713 = vmatpush.msra.mxu0 %v681
          %714 = vmatpush.msra.mxu0 %v679
          %715 = vmatpush.msra.mxu0 %v677
          %716 = vmatmul.f32.gmra.mxu0 %v604
          %v717 = vpop.f32.mrf.mxu0
          %v718 = vadd.f32 0.0, %v717
          %719 = vmatmul.f32.gmra.mxu0 %v607
          %v720 = vpop.f32.mrf.mxu0
          %v721 = vadd.f32 0.0, %v720
          %722 = vmatmul.f32.gmra.mxu0 %v610
          %v723 = vpop.f32.mrf.mxu0
          %v724 = vadd.f32 0.0, %v723
          %725 = vmatmul.f32.gmra.mxu0 %v613
          %v726 = vpop.f32.mrf.mxu0
          %v727 = vadd.f32 0.0, %v726
          %728 = vmatmul.f32.gmra.mxu0 %v616
          %v729 = vpop.f32.mrf.mxu0
          %v730 = vadd.f32 0.0, %v729
          %731 = vmatmul.f32.gmra.mxu0 %v619
          %v732 = vpop.f32.mrf.mxu0
          %v733 = vadd.f32 0.0, %v732
          %734 = vmatmul.f32.gmra.mxu0 %v622
          %v735 = vpop.f32.mrf.mxu0
          %v736 = vadd.f32 0.0, %v735
          %737 = vmatmul.f32.gmra.mxu0 %v625
          %v738 = vpop.f32.mrf.mxu0
          %v739 = vadd.f32 0.0, %v738
          %740 = vdwg.mxu0
          %v742 = vsel %vm602, %v718, 0
          %v745 = vsel %vm602, %v721, 0
          %v748 = vsel %vm602, %v724, 0
          %v751 = vsel %vm602, %v727, 0
          %v754 = vsel %vm602, %v730, 0
          %v757 = vsel %vm602, %v733, 0
          %v760 = vsel %vm602, %v736, 0
          %v763 = vsel %vm602, %v739, 0
          %765 = vmatpush.msra.mxu0 0.0
          %766 = vmatpush.msra.mxu0 0.0
          %767 = vmatpush.msra.mxu0 0.0
          %768 = vmatpush.msra.mxu0 0.0
          %769 = vmatpush.msra.mxu0 0.0
          %770 = vmatpush.msra.mxu0 0.0
          %771 = vmatpush.msra.mxu0 0.0
          %772 = vmatpush.msra.mxu0 0.0
          %773 = vmatpush.msra.mxu0 %v569
          %774 = vmatpush.msra.mxu0 %v568
          %775 = vmatpush.msra.mxu0 %v567
          %776 = vmatpush.msra.mxu0 %v566
          %777 = vmatpush.msra.mxu0 %v565
          %778 = vmatpush.msra.mxu0 %v564
          %779 = vmatpush.msra.mxu0 %v563
          %780 = vmatpush.msra.mxu0 %v562
          %781 = vmatmul.f32.gmra.mxu0 %v742
          %v782 = vpop.f32.mrf.mxu0
          %v783 = vadd.f32 0.0, %v782
          %784 = vmatmul.f32.gmra.mxu0 %v745
          %v785 = vpop.f32.mrf.mxu0
          %v786 = vadd.f32 0.0, %v785
          %787 = vmatmul.f32.gmra.mxu0 %v748
          %v788 = vpop.f32.mrf.mxu0
          %v789 = vadd.f32 0.0, %v788
          %790 = vmatmul.f32.gmra.mxu0 %v751
          %v791 = vpop.f32.mrf.mxu0
          %v792 = vadd.f32 0.0, %v791
          %793 = vmatmul.f32.gmra.mxu0 %v754
          %v794 = vpop.f32.mrf.mxu0
          %v795 = vadd.f32 0.0, %v794
          %796 = vmatmul.f32.gmra.mxu0 %v757
          %v797 = vpop.f32.mrf.mxu0
          %v798 = vadd.f32 0.0, %v797
          %799 = vmatmul.f32.gmra.mxu0 %v760
          %v800 = vpop.f32.mrf.mxu0
          %v801 = vadd.f32 0.0, %v800
          %802 = vmatmul.f32.gmra.mxu0 %v763
          %v803 = vpop.f32.mrf.mxu0
          %v804 = vadd.f32 0.0, %v803
          %805 = vdwg.mxu0
          %806 = vst.msk [vmem:[%s143] sm:$0xff] %vm602, %v522
          %807 = vst.msk [vmem:[%s143 + $0x8] sm:$0xff] %vm602, %v523
          %808 = vst.msk [vmem:[%s143 + $0x10] sm:$0xff] %vm602, %v524
          %809 = vst.msk [vmem:[%s143 + $0x18] sm:$0xff] %vm602, %v525
          %810 = vst.msk [vmem:[%s143 + $0x20] sm:$0xff] %vm602, %v526
          %811 = vst.msk [vmem:[%s143 + $0x28] sm:$0xff] %vm602, %v527
          %812 = vst.msk [vmem:[%s143 + $0x30] sm:$0xff] %vm602, %v528
          %813 = vst.msk [vmem:[%s143 + $0x38] sm:$0xff] %vm602, %v529
          %s814 = scalar_lea.vmem %s143, 64 [#allocation3]
          %815 = vst.msk [vmem:[%s814] sm:$0xff] %vm602, %v645
          %816 = vst.msk [vmem:[%s814 + $0x8] sm:$0xff] %vm602, %v648
          %817 = vst.msk [vmem:[%s814 + $0x10] sm:$0xff] %vm602, %v651
          %818 = vst.msk [vmem:[%s814 + $0x18] sm:$0xff] %vm602, %v654
          %819 = vst.msk [vmem:[%s814 + $0x20] sm:$0xff] %vm602, %v657
          %820 = vst.msk [vmem:[%s814 + $0x28] sm:$0xff] %vm602, %v660
          %821 = vst.msk [vmem:[%s814 + $0x30] sm:$0xff] %vm602, %v663
          %822 = vst.msk [vmem:[%s814 + $0x38] sm:$0xff] %vm602, %v666
          %s823 = scalar_lea.vmem %s143, 128 [#allocation3]
          %824 = vst.msk [vmem:[%s823] sm:$0xff] %vm602, %v783
          %825 = vst.msk [vmem:[%s823 + $0x8] sm:$0xff] %vm602, %v786
          %826 = vst.msk [vmem:[%s823 + $0x10] sm:$0xff] %vm602, %v789
          %827 = vst.msk [vmem:[%s823 + $0x18] sm:$0xff] %vm602, %v792
          %828 = vst.msk [vmem:[%s823 + $0x20] sm:$0xff] %vm602, %v795
          %829 = vst.msk [vmem:[%s823 + $0x28] sm:$0xff] %vm602, %v798
          %830 = vst.msk [vmem:[%s823 + $0x30] sm:$0xff] %vm602, %v801
          %831 = vst.msk [vmem:[%s823 + $0x38] sm:$0xff] %vm602, %v804
        $region32: #{tpu_custom_call.1} parent=23 // pred_fallthru
          _
        %s832 = sand.u32 %s74, 1
        %s833 = scalar_lea.sflag [#allocation4], %s832
        %s834 = sand.u32 %s74, 1
        %s835 = smul.addr %s834, 192
        %s836 = scalar_lea.vmem [#allocation3], %s835
        // Predicated region
        $region33: #{tpu_custom_call.1} parent=23 // pred_check
          %p837 = pneg %p84
        $region34: #{tpu_custom_call.1} parent=23 // pred_check_branch
          %839 = sbr.rel (%p837) target = $region36
        $region35: #{tpu_custom_call.1} parent=23 // pred_region
          %841 = vsyncadd %s833, 0
          %s842 = smul.addr %s21, 24
          %s843 = smul.addr %s20, 48
          %s844 = sadd.s32 %s842, %s843
          %s845 = smul.addr %s844, 8
          %s846 = scalar_lea.hbm %s1, %s845
          %s847 = sshll.u32 %s836, 4
          %s848 = int_to_ptr.vmem [resolvable:$true] %s847
          %s849 = sshll.u32 %s846, 4
          %s850 = int_to_ptr.hbm [resolvable:$true] %s849
          %855 = dma.vmem_to_hbm [thread:$0]  %s848, 3072, %s850, %s833, 128, 128, 8
        $region36: #{tpu_custom_call.1} parent=23 // pred_fallthru
          _
      $region24: #{tpu_custom_call.1} parent=5 // pred_fallthru
        _
      %p856 = scmp.le.s32.totalorder 2, %s10
      // Predicated region
      $region37: #{tpu_custom_call.1} parent=5 // pred_check
        %p857 = pneg %p856
      $region38: #{tpu_custom_call.1} parent=5 // pred_check_branch
        %859 = sbr.rel (%p857) target = $region40
      $region39: #{tpu_custom_call.1} parent=5 // pred_region
        %s860 = ssub.s32 %s10, 2
        // Predicated region
        $region41: #{tpu_custom_call.1} parent=39 // pred_check
          %p861 = pneg %p90
        $region42: #{tpu_custom_call.1} parent=39 // pred_check_branch
          %863 = sbr.rel (%p861) target = $region44
        $region43: #{tpu_custom_call.1} parent=39 // pred_region
          %s864 = sand.u32 %s75, 1
          %s865 = scalar_lea.sflag [#allocation4], %s864
          %s866 = sand.u32 %s75, 1
          %s867 = smul.addr %s866, 192
          %s868 = scalar_lea.vmem [#allocation3], %s867
          %870 = dma.done %s865, 3072
        $region44: #{tpu_custom_call.1} parent=39 // pred_fallthru
          _
      $region40: #{tpu_custom_call.1} parent=5 // pred_fallthru
        _
    $region6: #{tpu_custom_call.1} parent=1 // loop_footer
      %s14 = sadd.s32 1, %s10
    $region7: #{tpu_custom_call.1} parent=1 // loop_footer_branch
      %9 = sbr.rel target = $region3
    $region8: #{tpu_custom_call.1} parent=1 // loop_exit
      _
    %871 = vsyncpa [#allocation4], 1
    %s872 = scalar_lea.sflag [#allocation4], 1
    %873 = vsyncpa %s872, 1

</llo_original>
